<compile_context>
chip_gen: v5e
topology: v5e:2x2
jax: 0.10.0
libtpu: 0.0.40
codegen_flags: <defaults>
</compile_context>

<pallas_src>
import jax
import jax.numpy as jnp
from jax.experimental import pallas as pl
from jax.experimental.pallas import tpu as pltpu


def coord_att_kernel(x_ref, w1_ref, b1_ref, w2_ref, b2_ref, w3_ref, b3_ref,
                     phm_ref, pwm_ref, bh_ref, bw_ref, o_ref):
    bt = x_ref.shape[0]
    h = phm_ref.shape[1]

    # Parameters / constant matrices (hoisted out of the batch loop).
    w1 = w1_ref[...]        # (MIP, C)   conv1 with BN folded in
    b1 = b1_ref[...]        # (MIP, 1)
    w2 = w2_ref[...]        # (OUP, MIP)
    b2 = b2_ref[...]        # (OUP, 1)
    w3 = w3_ref[...]        # (OUP, MIP)
    b3 = b3_ref[...]        # (OUP, 1)
    phm = phm_ref[...]      # (HW, H)  mean-over-W pooling matrix
    pwm = pwm_ref[...]      # (HW, W)  mean-over-H pooling matrix
    bh = bh_ref[...]        # (H, HW)  broadcast h-attention over W
    bw = bw_ref[...]        # (W, HW)  broadcast w-attention over H

    for b in range(bt):                       # static unroll over batch tile
        xb = x_ref[b].astype(jnp.float32)     # (C, HW)

        # ---- coordinate pooling (AdaptiveAvgPool2d((None,1)) / ((1,None))) ----
        ph = jnp.dot(xb, phm, preferred_element_type=jnp.float32)   # (C, H)
        pw = jnp.dot(xb, pwm, preferred_element_type=jnp.float32)   # (C, W)
        p = jnp.concatenate([ph, pw], axis=-1)                      # (C, H+W)

        # ---- conv1 (+ folded BN) + h_swish, single fused matmul ----
        y = jnp.dot(w1, p, preferred_element_type=jnp.float32) + b1  # (MIP, H+W)
        y = y * jnp.clip(y + 3.0, 0.0, 6.0) * (1.0 / 6.0)            # h_swish

        yh = y[:, :h]                                                # (MIP, H)
        yw = y[:, h:]                                                # (MIP, W)

        # ---- conv2 / conv3 + sigmoid ----
        a_h = jax.nn.sigmoid(
            jnp.dot(w2, yh, preferred_element_type=jnp.float32) + b2)  # (OUP, H)
        a_w = jax.nn.sigmoid(
            jnp.dot(w3, yw, preferred_element_type=jnp.float32) + b3)  # (OUP, W)

        # ---- identity * x_w * x_h, built lane-dense via broadcast matmuls ----
        att = (jnp.dot(a_h, bh, preferred_element_type=jnp.float32)
               * jnp.dot(a_w, bw, preferred_element_type=jnp.float32))  # (OUP, HW)
        o_ref[b] = (xb * att).astype(o_ref.dtype)


def coord_att(x, params):
    n, c, h, w = x.shape
    hw = h * w
    mip = params["w1"].shape[0]
    oup = params["w2"].shape[0]
    # The final broadcast multiply requires oup == inp (same as the PyTorch
    # module when configured with inp == oup).
    assert oup == c, "CoordAtt kernel requires oup == inp (== C)"

    x_flat = x.reshape(n, c, hw)   # lane-dense layout: HW on the lane axis

    # Constant pooling / broadcast matrices (tiny; constant-folded under jit).
    dt = jnp.float32
    row = jnp.arange(hw) // w
    col = jnp.arange(hw) % w
    phm = (row[:, None] == jnp.arange(h)[None, :]).astype(dt) / w    # (HW, H)
    pwm = (col[:, None] == jnp.arange(w)[None, :]).astype(dt) / h    # (HW, W)
    bh = (jnp.arange(h)[:, None] == row[None, :]).astype(dt)         # (H, HW)
    bw = (jnp.arange(w)[:, None] == col[None, :]).astype(dt)         # (W, HW)

    plist = [params["w1"], params["b1"], params["w2"], params["b2"],
             params["w3"], params["b3"], phm, pwm, bh, bw]

    # ---- batch-tile sizing: aim for ~MiB blocks, keep >= 2 grid steps ----
    itemsize = x.dtype.itemsize
    per_batch = c * hw * itemsize
    bt = max(1, min(n, (2 << 20) // max(per_batch, 1)))
    if n >= 2:
        bt = min(bt, max(1, n // 2))          # keep both v7x TensorCores busy
    while n % bt:
        bt -= 1

    block_bytes = bt * per_batch
    aux_bytes = sum(int(p.size) * 4 for p in plist)
    # double-buffered in + out blocks + params + headroom, capped v7x-safe
    vmem_limit = int(min(max(6 * block_bytes + 4 * aux_bytes + (2 << 20),
                             32 << 20), 48 << 20))

    flops = 2 * n * (c * hw * (h + w)              # pooling matmuls
                     + mip * c * (h + w)           # conv1
                     + 2 * oup * mip * (h + w)     # conv2 + conv3
                     + oup * (h + w) * hw)         # broadcast matmuls
    flops += 5 * n * c * hw                        # epilogue elementwise
    cost = pl.CostEstimate(flops=int(flops),
                           transcendentals=int(n * oup * (h + w)),
                           bytes_accessed=int(2 * n * c * hw * itemsize))

    def full_spec(p):
        nd = p.ndim
        return pl.BlockSpec(p.shape, lambda b, _nd=nd: (0,) * _nd)

    out = pl.pallas_call(
        coord_att_kernel,
        out_shape=jax.ShapeDtypeStruct((n, c, hw), x.dtype),
        grid=(n // bt,),
        in_specs=[pl.BlockSpec((bt, c, hw), lambda b: (b, 0, 0))]
                 + [full_spec(p) for p in plist],
        out_specs=pl.BlockSpec((bt, c, hw), lambda b: (b, 0, 0)),
        compiler_params=pltpu.CompilerParams(
            dimension_semantics=("parallel",),
            vmem_limit_bytes=vmem_limit),
        cost_estimate=cost,
    )(x_flat, *plist)
    return out.reshape(n, c, h, w)


def fold_params(raw, eps=1e-5):
    """Fold eval-mode BatchNorm into conv1's weight/bias (exact)."""
    scale = raw["bn_gamma"] / jnp.sqrt(raw["bn_var"] + eps)
    shift = raw["bn_beta"] - raw["bn_mean"] * scale
    w1f = raw["w1"] * scale[:, None]
    b1f = scale * raw["b1"] + shift
    return {
        "w1": w1f, "b1": b1f.reshape(-1, 1),
        "w2": raw["w2"], "b2": raw["b2"].reshape(-1, 1),
        "w3": raw["w3"], "b3": raw["b3"].reshape(-1, 1),
    }


def coord_att_reference(x, raw, eps=1e-5):
    """Pure-JAX mirror of the PyTorch forward (eval-mode BN), NCHW."""
    n, c, h, w = x.shape
    x_h = jnp.mean(x, axis=3, keepdims=True)                        # (n,c,h,1)
    x_w = jnp.mean(x, axis=2, keepdims=True).transpose(0, 1, 3, 2)  # (n,c,w,1)
    y = jnp.concatenate([x_h, x_w], axis=2)                         # (n,c,h+w,1)
    y = jnp.einsum("mc,nchw->nmhw", raw["w1"], y) + raw["b1"][None, :, None, None]
    y = (y - raw["bn_mean"][None, :, None, None]) / jnp.sqrt(
        raw["bn_var"][None, :, None, None] + eps)
    y = y * raw["bn_gamma"][None, :, None, None] + raw["bn_beta"][None, :, None, None]
    y = y * jnp.clip(y + 3.0, 0.0, 6.0) / 6.0
    yh, yw = y[:, :, :h, :], y[:, :, h:, :]
    yw = yw.transpose(0, 1, 3, 2)
    a_h = jax.nn.sigmoid(jnp.einsum("om,nmhw->nohw", raw["w2"], yh)
                         + raw["b2"][None, :, None, None])          # (n,oup,h,1)
    a_w = jax.nn.sigmoid(jnp.einsum("om,nmhw->nohw", raw["w3"], yw)
                         + raw["b3"][None, :, None, None])          # (n,oup,1,w)
    return x * a_w * a_h


if __name__ == "__main__":
    # Module config: inp = oup = C, groups = 4  ->  mip = max(8, C // 4)
    N, C, H, W = 2, 4, 16, 16
    INP = OUP = C
    GROUPS = 4
    MIP = max(8, INP // GROUPS)
    EPS = 1e-5

    key = jax.random.PRNGKey(0)
    keys = jax.random.split(key, 12)

    x = jax.random.normal(keys[0], (N, C, H, W), dtype=jnp.float32)

    raw = {
        "w1": jax.random.normal(keys[1], (MIP, INP), dtype=jnp.float32) * 0.3,
        "b1": jax.random.normal(keys[2], (MIP,), dtype=jnp.float32) * 0.1,
        "bn_gamma": 1.0 + 0.1 * jax.random.normal(keys[3], (MIP,), dtype=jnp.float32),
        "bn_beta": 0.1 * jax.random.normal(keys[4], (MIP,), dtype=jnp.float32),
        "bn_mean": 0.1 * jax.random.normal(keys[5], (MIP,), dtype=jnp.float32),
        "bn_var": 0.5 + jax.random.uniform(keys[6], (MIP,), dtype=jnp.float32),
        "w2": jax.random.normal(keys[7], (OUP, MIP), dtype=jnp.float32) * 0.3,
        "b2": jax.random.normal(keys[8], (OUP,), dtype=jnp.float32) * 0.1,
        "w3": jax.random.normal(keys[9], (OUP, MIP), dtype=jnp.float32) * 0.3,
        "b3": jax.random.normal(keys[10], (OUP,), dtype=jnp.float32) * 0.1,
    }

    params = fold_params(raw, EPS)

    out = coord_att(x, params)
    out = jax.block_until_ready(out)

    ref = coord_att_reference(x, raw, EPS)
    assert out.shape == (N, C, H, W)
    max_err = float(jnp.max(jnp.abs(out - ref)))
    assert jnp.allclose(out, ref, rtol=1e-4, atol=1e-4), (
        f"mismatch vs reference (max abs err {max_err})")

    print("KERNEL_OK")
</pallas_src>

<mosaic_0001>
module attributes {stable_mosaic.version = 11 : i64} {
  func.func @coord_att_kernel(%arg0: i32, %arg1: memref<1x4x256xf32, #tpu.memory_space<vmem>>, %arg2: memref<8x4xf32, #tpu.memory_space<vmem>>, %arg3: memref<8x1xf32, #tpu.memory_space<vmem>>, %arg4: memref<4x8xf32, #tpu.memory_space<vmem>>, %arg5: memref<4x1xf32, #tpu.memory_space<vmem>>, %arg6: memref<4x8xf32, #tpu.memory_space<vmem>>, %arg7: memref<4x1xf32, #tpu.memory_space<vmem>>, %arg8: memref<256x16xf32, #tpu.memory_space<vmem>>, %arg9: memref<256x16xf32, #tpu.memory_space<vmem>>, %arg10: memref<16x256xf32, #tpu.memory_space<vmem>>, %arg11: memref<16x256xf32, #tpu.memory_space<vmem>>, %arg12: memref<1x4x256xf32, #tpu.memory_space<vmem>>) attributes {dimension_semantics = [#tpu.dimension_semantics<parallel>], iteration_bounds = array<i64: 2>, scalar_prefetch = 0 : i64, scratch_operands = 0 : i64, tpu.core_type = #tpu.core_type<tc>, window_params = [{transform_indices = @transform_0, window_bounds = array<i64: 1, 4, 256>}, {pipeline_mode = #tpu.pipeline_mode<synchronous>, transform_indices = @transform_1, window_bounds = array<i64: 8, 4>}, {pipeline_mode = #tpu.pipeline_mode<synchronous>, transform_indices = @transform_2, window_bounds = array<i64: 8, 1>}, {pipeline_mode = #tpu.pipeline_mode<synchronous>, transform_indices = @transform_3, window_bounds = array<i64: 4, 8>}, {pipeline_mode = #tpu.pipeline_mode<synchronous>, transform_indices = @transform_4, window_bounds = array<i64: 4, 1>}, {pipeline_mode = #tpu.pipeline_mode<synchronous>, transform_indices = @transform_5, window_bounds = array<i64: 4, 8>}, {pipeline_mode = #tpu.pipeline_mode<synchronous>, transform_indices = @transform_6, window_bounds = array<i64: 4, 1>}, {pipeline_mode = #tpu.pipeline_mode<synchronous>, transform_indices = @transform_7, window_bounds = array<i64: 256, 16>}, {pipeline_mode = #tpu.pipeline_mode<synchronous>, transform_indices = @transform_8, window_bounds = array<i64: 256, 16>}, {pipeline_mode = #tpu.pipeline_mode<synchronous>, transform_indices = @transform_9, window_bounds = array<i64: 16, 256>}, {pipeline_mode = #tpu.pipeline_mode<synchronous>, transform_indices = @transform_10, window_bounds = array<i64: 16, 256>}, {transform_indices = @transform_11, window_bounds = array<i64: 1, 4, 256>}]} {
    %c0 = arith.constant 0 : index
    %c0_0 = arith.constant 0 : index
    %0 = vector.load %arg2[%c0, %c0_0] : memref<8x4xf32, #tpu.memory_space<vmem>>, vector<8x4xf32>
    %c0_1 = arith.constant 0 : index
    %c0_2 = arith.constant 0 : index
    %1 = vector.load %arg3[%c0_1, %c0_2] : memref<8x1xf32, #tpu.memory_space<vmem>>, vector<8x1xf32>
    %c0_3 = arith.constant 0 : index
    %c0_4 = arith.constant 0 : index
    %2 = vector.load %arg4[%c0_3, %c0_4] : memref<4x8xf32, #tpu.memory_space<vmem>>, vector<4x8xf32>
    %c0_5 = arith.constant 0 : index
    %c0_6 = arith.constant 0 : index
    %3 = vector.load %arg5[%c0_5, %c0_6] : memref<4x1xf32, #tpu.memory_space<vmem>>, vector<4x1xf32>
    %c0_7 = arith.constant 0 : index
    %c0_8 = arith.constant 0 : index
    %4 = vector.load %arg6[%c0_7, %c0_8] : memref<4x8xf32, #tpu.memory_space<vmem>>, vector<4x8xf32>
    %c0_9 = arith.constant 0 : index
    %c0_10 = arith.constant 0 : index
    %5 = vector.load %arg7[%c0_9, %c0_10] : memref<4x1xf32, #tpu.memory_space<vmem>>, vector<4x1xf32>
    %c0_11 = arith.constant 0 : index
    %c0_12 = arith.constant 0 : index
    %6 = vector.load %arg8[%c0_11, %c0_12] : memref<256x16xf32, #tpu.memory_space<vmem>>, vector<256x16xf32>
    %c0_13 = arith.constant 0 : index
    %c0_14 = arith.constant 0 : index
    %7 = vector.load %arg9[%c0_13, %c0_14] : memref<256x16xf32, #tpu.memory_space<vmem>>, vector<256x16xf32>
    %c0_15 = arith.constant 0 : index
    %c0_16 = arith.constant 0 : index
    %8 = vector.load %arg10[%c0_15, %c0_16] : memref<16x256xf32, #tpu.memory_space<vmem>>, vector<16x256xf32>
    %c0_17 = arith.constant 0 : index
    %c0_18 = arith.constant 0 : index
    %9 = vector.load %arg11[%c0_17, %c0_18] : memref<16x256xf32, #tpu.memory_space<vmem>>, vector<16x256xf32>
    %c0_19 = arith.constant 0 : index
    %c0_20 = arith.constant 0 : index
    %c0_21 = arith.constant 0 : index
    %10 = vector.load %arg1[%c0_19, %c0_20, %c0_21] : memref<1x4x256xf32, #tpu.memory_space<vmem>>, vector<1x4x256xf32>
    %11 = vector.shape_cast %10 : vector<1x4x256xf32> to vector<4x256xf32>
    %cst = arith.constant dense<0.000000e+00> : vector<4x16xf32>
    %12 = tpu.matmul %11, %6, %cst {dimension_numbers = #tpu.dot_dimension_numbers<[1], [0], [0], [1], [0, 0, 1, 1], [], []>} : vector<4x256xf32>, vector<256x16xf32>, vector<4x16xf32> -> vector<4x16xf32>
    %cst_22 = arith.constant dense<0.000000e+00> : vector<4x16xf32>
    %13 = tpu.matmul %11, %7, %cst_22 {dimension_numbers = #tpu.dot_dimension_numbers<[1], [0], [0], [1], [0, 0, 1, 1], [], []>} : vector<4x256xf32>, vector<256x16xf32>, vector<4x16xf32> -> vector<4x16xf32>
    %14 = tpu.concatenate %12, %13 in 1 : vector<4x16xf32>, vector<4x16xf32> -> vector<4x32xf32>
    %cst_23 = arith.constant dense<0.000000e+00> : vector<8x32xf32>
    %15 = tpu.matmul %0, %14, %cst_23 {dimension_numbers = #tpu.dot_dimension_numbers<[1], [0], [0], [1], [0, 0, 1, 1], [], []>} : vector<8x4xf32>, vector<4x32xf32>, vector<8x32xf32> -> vector<8x32xf32>
    %16 = vector.broadcast %1 : vector<8x1xf32> to vector<8x32xf32>
    %17 = arith.addf %15, %16 : vector<8x32xf32>
    %cst_24 = arith.constant 3.000000e+00 : f32
    %18 = vector.broadcast %cst_24 : f32 to vector<8x32xf32>
    %19 = arith.addf %17, %18 : vector<8x32xf32>
    %cst_25 = arith.constant 0.000000e+00 : f32
    %cst_26 = arith.constant 6.000000e+00 : f32
    %20 = vector.broadcast %cst_25 : f32 to vector<8x32xf32>
    %21 = arith.maximumf %20, %19 : vector<8x32xf32>
    %22 = vector.broadcast %cst_26 : f32 to vector<8x32xf32>
    %23 = arith.minimumf %22, %21 : vector<8x32xf32>
    %24 = arith.mulf %17, %23 : vector<8x32xf32>
    %cst_27 = arith.constant 0.166666672 : f32
    %25 = vector.broadcast %cst_27 : f32 to vector<8x32xf32>
    %26 = arith.mulf %24, %25 : vector<8x32xf32>
    %27 = vector.extract_strided_slice %26 {offsets = [0, 0], sizes = [8, 16], strides = [1, 1]} : vector<8x32xf32> to vector<8x16xf32>
    %28 = vector.extract_strided_slice %26 {offsets = [0, 16], sizes = [8, 16], strides = [1, 1]} : vector<8x32xf32> to vector<8x16xf32>
    %cst_28 = arith.constant dense<0.000000e+00> : vector<4x16xf32>
    %29 = tpu.matmul %2, %27, %cst_28 {dimension_numbers = #tpu.dot_dimension_numbers<[1], [0], [0], [1], [0, 0, 1, 1], [], []>} : vector<4x8xf32>, vector<8x16xf32>, vector<4x16xf32> -> vector<4x16xf32>
    %30 = vector.broadcast %3 : vector<4x1xf32> to vector<4x16xf32>
    %31 = arith.addf %29, %30 : vector<4x16xf32>
    %32 = arith.negf %31 : vector<4x16xf32>
    %33 = math.exp %32 : vector<4x16xf32>
    %cst_29 = arith.constant 1.000000e+00 : f32
    %34 = vector.broadcast %cst_29 : f32 to vector<4x16xf32>
    %35 = arith.addf %34, %33 : vector<4x16xf32>
    %36 = arith.divf %34, %35 : vector<4x16xf32>
    %cst_30 = arith.constant dense<0.000000e+00> : vector<4x16xf32>
    %37 = tpu.matmul %4, %28, %cst_30 {dimension_numbers = #tpu.dot_dimension_numbers<[1], [0], [0], [1], [0, 0, 1, 1], [], []>} : vector<4x8xf32>, vector<8x16xf32>, vector<4x16xf32> -> vector<4x16xf32>
    %38 = vector.broadcast %5 : vector<4x1xf32> to vector<4x16xf32>
    %39 = arith.addf %37, %38 : vector<4x16xf32>
    %40 = arith.negf %39 : vector<4x16xf32>
    %41 = math.exp %40 : vector<4x16xf32>
    %cst_31 = arith.constant 1.000000e+00 : f32
    %42 = vector.broadcast %cst_31 : f32 to vector<4x16xf32>
    %43 = arith.addf %42, %41 : vector<4x16xf32>
    %44 = arith.divf %42, %43 : vector<4x16xf32>
    %cst_32 = arith.constant dense<0.000000e+00> : vector<4x256xf32>
    %45 = tpu.matmul %36, %8, %cst_32 {dimension_numbers = #tpu.dot_dimension_numbers<[1], [0], [0], [1], [0, 0, 1, 1], [], []>} : vector<4x16xf32>, vector<16x256xf32>, vector<4x256xf32> -> vector<4x256xf32>
    %cst_33 = arith.constant dense<0.000000e+00> : vector<4x256xf32>
    %46 = tpu.matmul %44, %9, %cst_33 {dimension_numbers = #tpu.dot_dimension_numbers<[1], [0], [0], [1], [0, 0, 1, 1], [], []>} : vector<4x16xf32>, vector<16x256xf32>, vector<4x256xf32> -> vector<4x256xf32>
    %47 = arith.mulf %45, %46 : vector<4x256xf32>
    %48 = arith.mulf %11, %47 : vector<4x256xf32>
    %c0_34 = arith.constant 0 : index
    %c0_35 = arith.constant 0 : index
    %c0_36 = arith.constant 0 : index
    %49 = vector.load %arg12[%c0_34, %c0_35, %c0_36] : memref<1x4x256xf32, #tpu.memory_space<vmem>>, vector<1x4x256xf32>
    %50 = vector.shape_cast %49 : vector<1x4x256xf32> to vector<4x256xf32>
    %51 = vector.shape_cast %48 : vector<4x256xf32> to vector<1x4x256xf32>
    tpu.vector_store %arg12[%c0_34, %c0_35, %c0_36], %51 {strides = array<i32>} : memref<1x4x256xf32, #tpu.memory_space<vmem>>, vector<1x4x256xf32>,
    return
  }
  func.func @transform_0(%arg0: i32) -> (i32, i32, i32) {
    %c0_i32 = arith.constant 0 : i32
    %c0_i32_0 = arith.constant 0 : i32
    %c0_i32_1 = arith.constant 0 : i32
    return %arg0, %c0_i32, %c0_i32_0 : i32, i32, i32
  }
  func.func @transform_1(%arg0: i32) -> (i32, i32) {
    %c0_i32 = arith.constant 0 : i32
    %c0_i32_0 = arith.constant 0 : i32
    %c0_i32_1 = arith.constant 0 : i32
    return %c0_i32, %c0_i32_0 : i32, i32
  }
  func.func @transform_2(%arg0: i32) -> (i32, i32) {
    %c0_i32 = arith.constant 0 : i32
    %c0_i32_0 = arith.constant 0 : i32
    %c0_i32_1 = arith.constant 0 : i32
    return %c0_i32, %c0_i32_0 : i32, i32
  }
  func.func @transform_3(%arg0: i32) -> (i32, i32) {
    %c0_i32 = arith.constant 0 : i32
    %c0_i32_0 = arith.constant 0 : i32
    %c0_i32_1 = arith.constant 0 : i32
    return %c0_i32, %c0_i32_0 : i32, i32
  }
  func.func @transform_4(%arg0: i32) -> (i32, i32) {
    %c0_i32 = arith.constant 0 : i32
    %c0_i32_0 = arith.constant 0 : i32
    %c0_i32_1 = arith.constant 0 : i32
    return %c0_i32, %c0_i32_0 : i32, i32
  }
  func.func @transform_5(%arg0: i32) -> (i32, i32) {
    %c0_i32 = arith.constant 0 : i32
    %c0_i32_0 = arith.constant 0 : i32
    %c0_i32_1 = arith.constant 0 : i32
    return %c0_i32, %c0_i32_0 : i32, i32
  }
  func.func @transform_6(%arg0: i32) -> (i32, i32) {
    %c0_i32 = arith.constant 0 : i32
    %c0_i32_0 = arith.constant 0 : i32
    %c0_i32_1 = arith.constant 0 : i32
    return %c0_i32, %c0_i32_0 : i32, i32
  }
  func.func @transform_7(%arg0: i32) -> (i32, i32) {
    %c0_i32 = arith.constant 0 : i32
    %c0_i32_0 = arith.constant 0 : i32
    %c0_i32_1 = arith.constant 0 : i32
    return %c0_i32, %c0_i32_0 : i32, i32
  }
  func.func @transform_8(%arg0: i32) -> (i32, i32) {
    %c0_i32 = arith.constant 0 : i32
    %c0_i32_0 = arith.constant 0 : i32
    %c0_i32_1 = arith.constant 0 : i32
    return %c0_i32, %c0_i32_0 : i32, i32
  }
  func.func @transform_9(%arg0: i32) -> (i32, i32) {
    %c0_i32 = arith.constant 0 : i32
    %c0_i32_0 = arith.constant 0 : i32
    %c0_i32_1 = arith.constant 0 : i32
    return %c0_i32, %c0_i32_0 : i32, i32
  }
  func.func @transform_10(%arg0: i32) -> (i32, i32) {
    %c0_i32 = arith.constant 0 : i32
    %c0_i32_0 = arith.constant 0 : i32
    %c0_i32_1 = arith.constant 0 : i32
    return %c0_i32, %c0_i32_0 : i32, i32
  }
  func.func @transform_11(%arg0: i32) -> (i32, i32, i32) {
    %c0_i32 = arith.constant 0 : i32
    %c0_i32_0 = arith.constant 0 : i32
    %c0_i32_1 = arith.constant 0 : i32
    return %arg0, %c0_i32, %c0_i32_0 : i32, i32, i32
  }
}

</mosaic_0001>

<llo_original>
// kernel: tpu_custom_call.1
$region0: #{tpu_custom_call.1}
  #allocation0 [shape = 'u32[]', space=smem, size = 0x4, offset = 0x4, fixed_abs, tag = 'smem constant byte address 0x4 - core index']
  #allocation1 [shape = 'u32[72,128]{1,0:T(1,128)}', space=vmem, size = 0x9000, scoped, tag = 'internal scratch']
  %s0 = inlined_call_operand.vmem [shape: f32[2,4,256], index: 0, kind: input, shape index: {}]
  %s1 = inlined_call_operand.vmem [shape: f32[8,4], index: 1, kind: input, shape index: {}]
  %s2 = inlined_call_operand.vmem [shape: f32[8,1], index: 2, kind: input, shape index: {}]
  %s3 = inlined_call_operand.vmem [shape: f32[4,8], index: 3, kind: input, shape index: {}]
  %s4 = inlined_call_operand.vmem [shape: f32[4,1], index: 4, kind: input, shape index: {}]
  %s5 = inlined_call_operand.vmem [shape: f32[4,8], index: 5, kind: input, shape index: {}]
  %s6 = inlined_call_operand.vmem [shape: f32[4,1], index: 6, kind: input, shape index: {}]
  %s7 = inlined_call_operand.vmem [shape: f32[256,16], index: 7, kind: input, shape index: {}]
  %s8 = inlined_call_operand.vmem [shape: f32[256,16], index: 8, kind: input, shape index: {}]
  %s9 = inlined_call_operand.vmem [shape: f32[16,256], index: 9, kind: input, shape index: {}]
  %s10 = inlined_call_operand.vmem [shape: f32[16,256], index: 10, kind: input, shape index: {}]
  %s11 = inlined_call_operand.hbm [shape: f32[2,4,256], index: 11, kind: output, shape index: {}]
  %s12 = sld [smem:[#allocation0]]
  $region77: #{tpu_custom_call.1} parent=0
    _
  %s14 = ssub.s32 1, %s12
  %s15 = scalar_select 0, %s14, %s12
  $region1: #{tpu_custom_call.1} parent=0
    #allocation2 [shape = 'u8[8192]{0}', space=vmem, size = 0x2000, scoped, tag = 'output window, operand 0']
    #allocation3 [shape = 's32[2]{0}', space=sflag, size = 0x8, scoped, tag = 'scoped memory for tpu_custom_call.1']
    %16 = vsyncpa [#allocation3], 0
    %s17 = scalar_lea.sflag [#allocation3], 1
    %18 = vsyncpa %s17, 0
    loop: start=0, step=1, limit=4
    $region2: #{tpu_custom_call.1} parent=1 // loop_pre_header
      _
    $region3: #{tpu_custom_call.1} parent=1 // loop_header
      %s20 = sphi 0, %s24
      %p21 = scmp.ge.s32.totalorder %s20, 4
      %s30 = sphi 0, %s32
      %s33 = sphi 0, %s30
      %s34 = sphi 0, %s33
      %s50 = sphi 0, %s34
      %s54 = sphi 0, %s54
      %s56 = sphi 0, %s54
      %s57 = sphi 0, %s56
      %s71 = sphi 0, %s57
      %s75 = sphi 0, %s75
      %s77 = sphi 0, %s75
      %s78 = sphi 0, %s77
      %s92 = sphi 0, %s78
      %s96 = sphi 0, %s96
      %s98 = sphi 0, %s96
      %s99 = sphi 0, %s98
      %s113 = sphi 0, %s99
      %s117 = sphi 0, %s117
      %s119 = sphi 0, %s117
      %s120 = sphi 0, %s119
      %s134 = sphi 0, %s120
      %s138 = sphi 0, %s138
      %s140 = sphi 0, %s138
      %s141 = sphi 0, %s140
      %s155 = sphi 0, %s141
      %s159 = sphi 0, %s159
      %s161 = sphi 0, %s159
      %s162 = sphi 0, %s161
      %s176 = sphi 0, %s162
      %s180 = sphi 0, %s180
      %s182 = sphi 0, %s180
      %s183 = sphi 0, %s182
      %s197 = sphi 0, %s183
      %s201 = sphi 0, %s201
      %s203 = sphi 0, %s201
      %s204 = sphi 0, %s203
      %s218 = sphi 0, %s204
      %s222 = sphi 0, %s222
      %s224 = sphi 0, %s222
      %s225 = sphi 0, %s224
      %s239 = sphi 0, %s225
      %s243 = sphi 0, %s243
      %s245 = sphi 0, %s243
      %s246 = sphi 0, %s245
      %s260 = sphi 0, %s246
      %s266 = sphi 0, %s268
      %s269 = sphi 0, %s266
      %s270 = sphi 0, %s269
      %s286 = sphi 0, %s270
    $region4: #{tpu_custom_call.1} parent=1 // loop_header_branch
      %23 = sbr.rel (%p21) target = $region8
    $region5: #{tpu_custom_call.1} parent=1 // loop_body
      %s25 = ssub.s32 %s20, 1
      %s26 = ssub.s32 %s20, 2
      %s27 = sadd.s32 %s20, 1
      %s28 = ssub.s32 %s20, %s27
      %p29 = scmp.eq.s32.totalorder %s28, 0
      %s31 = sadd.s32 %s30, 1
      %s32 = scalar_select %p29, %s30, %s31
      %p35 = pneg %p29
      %p36 = scmp.eq.s32.totalorder %s20, 1
      %p37 = por %p35, %p36
      %p38 = scmp.ne.s32.totalorder %s30, %s33
      %p39 = scmp.eq.s32.totalorder %s20, 0
      %p40 = por %p38, %p39
      %p41 = scmp.ne.s32.totalorder %s30, %s33
      %p42 = scmp.eq.s32.totalorder %s25, 1
      %p43 = por %p41, %p42
      %p44 = scmp.ne.s32.totalorder %s33, %s34
      %p45 = scmp.eq.s32.totalorder %s25, 0
      %p46 = por %p44, %p45
      %p47 = scmp.ne.s32.totalorder %s33, %s34
      %p48 = scmp.eq.s32.totalorder %s26, 1
      %p49 = por %p47, %p48
      %p51 = scmp.ne.s32.totalorder %s34, %s50
      %p52 = scmp.eq.s32.totalorder %s26, 0
      %p53 = por %p51, %p52
      %s55 = sadd.s32 %s54, 1
      %p58 = scmp.eq.s32.totalorder %s20, 1
      %p59 = scmp.ne.s32.totalorder %s54, %s56
      %p60 = scmp.eq.s32.totalorder %s20, 0
      %p61 = por %p59, %p60
      %p62 = scmp.ne.s32.totalorder %s54, %s56
      %p63 = scmp.eq.s32.totalorder %s25, 1
      %p64 = por %p62, %p63
      %p65 = scmp.ne.s32.totalorder %s56, %s57
      %p66 = scmp.eq.s32.totalorder %s25, 0
      %p67 = por %p65, %p66
      %p68 = scmp.ne.s32.totalorder %s56, %s57
      %p69 = scmp.eq.s32.totalorder %s26, 1
      %p70 = por %p68, %p69
      %p72 = scmp.ne.s32.totalorder %s57, %s71
      %p73 = scmp.eq.s32.totalorder %s26, 0
      %p74 = por %p72, %p73
      %s76 = sadd.s32 %s75, 1
      %p79 = scmp.eq.s32.totalorder %s20, 1
      %p80 = scmp.ne.s32.totalorder %s75, %s77
      %p81 = scmp.eq.s32.totalorder %s20, 0
      %p82 = por %p80, %p81
      %p83 = scmp.ne.s32.totalorder %s75, %s77
      %p84 = scmp.eq.s32.totalorder %s25, 1
      %p85 = por %p83, %p84
      %p86 = scmp.ne.s32.totalorder %s77, %s78
      %p87 = scmp.eq.s32.totalorder %s25, 0
      %p88 = por %p86, %p87
      %p89 = scmp.ne.s32.totalorder %s77, %s78
      %p90 = scmp.eq.s32.totalorder %s26, 1
      %p91 = por %p89, %p90
      %p93 = scmp.ne.s32.totalorder %s78, %s92
      %p94 = scmp.eq.s32.totalorder %s26, 0
      %p95 = por %p93, %p94
      %s97 = sadd.s32 %s96, 1
      %p100 = scmp.eq.s32.totalorder %s20, 1
      %p101 = scmp.ne.s32.totalorder %s96, %s98
      %p102 = scmp.eq.s32.totalorder %s20, 0
      %p103 = por %p101, %p102
      %p104 = scmp.ne.s32.totalorder %s96, %s98
      %p105 = scmp.eq.s32.totalorder %s25, 1
      %p106 = por %p104, %p105
      %p107 = scmp.ne.s32.totalorder %s98, %s99
      %p108 = scmp.eq.s32.totalorder %s25, 0
      %p109 = por %p107, %p108
      %p110 = scmp.ne.s32.totalorder %s98, %s99
      %p111 = scmp.eq.s32.totalorder %s26, 1
      %p112 = por %p110, %p111
      %p114 = scmp.ne.s32.totalorder %s99, %s113
      %p115 = scmp.eq.s32.totalorder %s26, 0
      %p116 = por %p114, %p115
      %s118 = sadd.s32 %s117, 1
      %p121 = scmp.eq.s32.totalorder %s20, 1
      %p122 = scmp.ne.s32.totalorder %s117, %s119
      %p123 = scmp.eq.s32.totalorder %s20, 0
      %p124 = por %p122, %p123
      %p125 = scmp.ne.s32.totalorder %s117, %s119
      %p126 = scmp.eq.s32.totalorder %s25, 1
      %p127 = por %p125, %p126
      %p128 = scmp.ne.s32.totalorder %s119, %s120
      %p129 = scmp.eq.s32.totalorder %s25, 0
      %p130 = por %p128, %p129
      %p131 = scmp.ne.s32.totalorder %s119, %s120
      %p132 = scmp.eq.s32.totalorder %s26, 1
      %p133 = por %p131, %p132
      %p135 = scmp.ne.s32.totalorder %s120, %s134
      %p136 = scmp.eq.s32.totalorder %s26, 0
      %p137 = por %p135, %p136
      %s139 = sadd.s32 %s138, 1
      %p142 = scmp.eq.s32.totalorder %s20, 1
      %p143 = scmp.ne.s32.totalorder %s138, %s140
      %p144 = scmp.eq.s32.totalorder %s20, 0
      %p145 = por %p143, %p144
      %p146 = scmp.ne.s32.totalorder %s138, %s140
      %p147 = scmp.eq.s32.totalorder %s25, 1
      %p148 = por %p146, %p147
      %p149 = scmp.ne.s32.totalorder %s140, %s141
      %p150 = scmp.eq.s32.totalorder %s25, 0
      %p151 = por %p149, %p150
      %p152 = scmp.ne.s32.totalorder %s140, %s141
      %p153 = scmp.eq.s32.totalorder %s26, 1
      %p154 = por %p152, %p153
      %p156 = scmp.ne.s32.totalorder %s141, %s155
      %p157 = scmp.eq.s32.totalorder %s26, 0
      %p158 = por %p156, %p157
      %s160 = sadd.s32 %s159, 1
      %p163 = scmp.eq.s32.totalorder %s20, 1
      %p164 = scmp.ne.s32.totalorder %s159, %s161
      %p165 = scmp.eq.s32.totalorder %s20, 0
      %p166 = por %p164, %p165
      %p167 = scmp.ne.s32.totalorder %s159, %s161
      %p168 = scmp.eq.s32.totalorder %s25, 1
      %p169 = por %p167, %p168
      %p170 = scmp.ne.s32.totalorder %s161, %s162
      %p171 = scmp.eq.s32.totalorder %s25, 0
      %p172 = por %p170, %p171
      %p173 = scmp.ne.s32.totalorder %s161, %s162
      %p174 = scmp.eq.s32.totalorder %s26, 1
      %p175 = por %p173, %p174
      %p177 = scmp.ne.s32.totalorder %s162, %s176
      %p178 = scmp.eq.s32.totalorder %s26, 0
      %p179 = por %p177, %p178
      %s181 = sadd.s32 %s180, 1
      %p184 = scmp.eq.s32.totalorder %s20, 1
      %p185 = scmp.ne.s32.totalorder %s180, %s182
      %p186 = scmp.eq.s32.totalorder %s20, 0
      %p187 = por %p185, %p186
      %p188 = scmp.ne.s32.totalorder %s180, %s182
      %p189 = scmp.eq.s32.totalorder %s25, 1
      %p190 = por %p188, %p189
      %p191 = scmp.ne.s32.totalorder %s182, %s183
      %p192 = scmp.eq.s32.totalorder %s25, 0
      %p193 = por %p191, %p192
      %p194 = scmp.ne.s32.totalorder %s182, %s183
      %p195 = scmp.eq.s32.totalorder %s26, 1
      %p196 = por %p194, %p195
      %p198 = scmp.ne.s32.totalorder %s183, %s197
      %p199 = scmp.eq.s32.totalorder %s26, 0
      %p200 = por %p198, %p199
      %s202 = sadd.s32 %s201, 1
      %p205 = scmp.eq.s32.totalorder %s20, 1
      %p206 = scmp.ne.s32.totalorder %s201, %s203
      %p207 = scmp.eq.s32.totalorder %s20, 0
      %p208 = por %p206, %p207
      %p209 = scmp.ne.s32.totalorder %s201, %s203
      %p210 = scmp.eq.s32.totalorder %s25, 1
      %p211 = por %p209, %p210
      %p212 = scmp.ne.s32.totalorder %s203, %s204
      %p213 = scmp.eq.s32.totalorder %s25, 0
      %p214 = por %p212, %p213
      %p215 = scmp.ne.s32.totalorder %s203, %s204
      %p216 = scmp.eq.s32.totalorder %s26, 1
      %p217 = por %p215, %p216
      %p219 = scmp.ne.s32.totalorder %s204, %s218
      %p220 = scmp.eq.s32.totalorder %s26, 0
      %p221 = por %p219, %p220
      %s223 = sadd.s32 %s222, 1
      %p226 = scmp.eq.s32.totalorder %s20, 1
      %p227 = scmp.ne.s32.totalorder %s222, %s224
      %p228 = scmp.eq.s32.totalorder %s20, 0
      %p229 = por %p227, %p228
      %p230 = scmp.ne.s32.totalorder %s222, %s224
      %p231 = scmp.eq.s32.totalorder %s25, 1
      %p232 = por %p230, %p231
      %p233 = scmp.ne.s32.totalorder %s224, %s225
      %p234 = scmp.eq.s32.totalorder %s25, 0
      %p235 = por %p233, %p234
      %p236 = scmp.ne.s32.totalorder %s224, %s225
      %p237 = scmp.eq.s32.totalorder %s26, 1
      %p238 = por %p236, %p237
      %p240 = scmp.ne.s32.totalorder %s225, %s239
      %p241 = scmp.eq.s32.totalorder %s26, 0
      %p242 = por %p240, %p241
      %s244 = sadd.s32 %s243, 1
      %p247 = scmp.eq.s32.totalorder %s20, 1
      %p248 = scmp.ne.s32.totalorder %s243, %s245
      %p249 = scmp.eq.s32.totalorder %s20, 0
      %p250 = por %p248, %p249
      %p251 = scmp.ne.s32.totalorder %s243, %s245
      %p252 = scmp.eq.s32.totalorder %s25, 1
      %p253 = por %p251, %p252
      %p254 = scmp.ne.s32.totalorder %s245, %s246
      %p255 = scmp.eq.s32.totalorder %s25, 0
      %p256 = por %p254, %p255
      %p257 = scmp.ne.s32.totalorder %s245, %s246
      %p258 = scmp.eq.s32.totalorder %s26, 1
      %p259 = por %p257, %p258
      %p261 = scmp.ne.s32.totalorder %s246, %s260
      %p262 = scmp.eq.s32.totalorder %s26, 0
      %p263 = por %p261, %p262
      %s264 = ssub.s32 %s20, %s27
      %p265 = scmp.eq.s32.totalorder %s264, 0
      %s267 = sadd.s32 %s266, 1
      %s268 = scalar_select %p265, %s266, %s267
      %p271 = pneg %p265
      %p272 = scmp.eq.s32.totalorder %s20, 1
      %p273 = por %p271, %p272
      %p274 = scmp.ne.s32.totalorder %s266, %s269
      %p275 = scmp.eq.s32.totalorder %s20, 0
      %p276 = por %p274, %p275
      %p277 = scmp.ne.s32.totalorder %s266, %s269
      %p278 = scmp.eq.s32.totalorder %s25, 1
      %p279 = por %p277, %p278
      %p280 = scmp.ne.s32.totalorder %s269, %s270
      %p281 = scmp.eq.s32.totalorder %s25, 0
      %p282 = por %p280, %p281
      %p283 = scmp.ne.s32.totalorder %s269, %s270
      %p284 = scmp.eq.s32.totalorder %s26, 1
      %p285 = por %p283, %p284
      %p287 = scmp.ne.s32.totalorder %s270, %s286
      %p288 = scmp.eq.s32.totalorder %s26, 0
      %p289 = por %p287, %p288
      %p290 = scmp.le.s32.totalorder 1, %s20
      %p291 = scmp.lt.s32.totalorder %s20, 3
      %p292 = pnand %p290, %p291
      %p293 = pneg %p292
      // Predicated region
      $region9: #{tpu_custom_call.1} parent=5 // pred_check
        _
      $region10: #{tpu_custom_call.1} parent=5 // pred_check_branch
        %295 = sbr.rel (%p292) target = $region12
      $region11: #{tpu_custom_call.1} parent=5 // pred_region
        %s296 = ssub.s32 %s20, 1
        // Predicated region
        $region13: #{tpu_custom_call.1} parent=11 // pred_check
          %p297 = pneg %p67
        $region14: #{tpu_custom_call.1} parent=11 // pred_check_branch
          %299 = sbr.rel (%p297) target = $region16
        $region15: #{tpu_custom_call.1} parent=11 // pred_region
          _
        $region16: #{tpu_custom_call.1} parent=11 // pred_fallthru
          _
        // Predicated region
        $region17: #{tpu_custom_call.1} parent=11 // pred_check
          %p300 = pneg %p88
        $region18: #{tpu_custom_call.1} parent=11 // pred_check_branch
          %302 = sbr.rel (%p300) target = $region20
        $region19: #{tpu_custom_call.1} parent=11 // pred_region
          _
        $region20: #{tpu_custom_call.1} parent=11 // pred_fallthru
          _
        // Predicated region
        $region21: #{tpu_custom_call.1} parent=11 // pred_check
          %p303 = pneg %p109
        $region22: #{tpu_custom_call.1} parent=11 // pred_check_branch
          %305 = sbr.rel (%p303) target = $region24
        $region23: #{tpu_custom_call.1} parent=11 // pred_region
          _
        $region24: #{tpu_custom_call.1} parent=11 // pred_fallthru
          _
        // Predicated region
        $region25: #{tpu_custom_call.1} parent=11 // pred_check
          %p306 = pneg %p130
        $region26: #{tpu_custom_call.1} parent=11 // pred_check_branch
          %308 = sbr.rel (%p306) target = $region28
        $region27: #{tpu_custom_call.1} parent=11 // pred_region
          _
        $region28: #{tpu_custom_call.1} parent=11 // pred_fallthru
          _
        // Predicated region
        $region29: #{tpu_custom_call.1} parent=11 // pred_check
          %p309 = pneg %p151
        $region30: #{tpu_custom_call.1} parent=11 // pred_check_branch
          %311 = sbr.rel (%p309) target = $region32
        $region31: #{tpu_custom_call.1} parent=11 // pred_region
          _
        $region32: #{tpu_custom_call.1} parent=11 // pred_fallthru
          _
        // Predicated region
        $region33: #{tpu_custom_call.1} parent=11 // pred_check
          %p312 = pneg %p172
        $region34: #{tpu_custom_call.1} parent=11 // pred_check_branch
          %314 = sbr.rel (%p312) target = $region36
        $region35: #{tpu_custom_call.1} parent=11 // pred_region
          _
        $region36: #{tpu_custom_call.1} parent=11 // pred_fallthru
          _
        // Predicated region
        $region37: #{tpu_custom_call.1} parent=11 // pred_check
          %p315 = pneg %p193
        $region38: #{tpu_custom_call.1} parent=11 // pred_check_branch
          %317 = sbr.rel (%p315) target = $region40
        $region39: #{tpu_custom_call.1} parent=11 // pred_region
          _
        $region40: #{tpu_custom_call.1} parent=11 // pred_fallthru
          _
        // Predicated region
        $region41: #{tpu_custom_call.1} parent=11 // pred_check
          %p318 = pneg %p214
        $region42: #{tpu_custom_call.1} parent=11 // pred_check_branch
          %320 = sbr.rel (%p318) target = $region44
        $region43: #{tpu_custom_call.1} parent=11 // pred_region
          _
        $region44: #{tpu_custom_call.1} parent=11 // pred_fallthru
          _
        // Predicated region
        $region45: #{tpu_custom_call.1} parent=11 // pred_check
          %p321 = pneg %p235
        $region46: #{tpu_custom_call.1} parent=11 // pred_check_branch
          %323 = sbr.rel (%p321) target = $region48
        $region47: #{tpu_custom_call.1} parent=11 // pred_region
          _
        $region48: #{tpu_custom_call.1} parent=11 // pred_fallthru
          _
        // Predicated region
        $region49: #{tpu_custom_call.1} parent=11 // pred_check
          %p324 = pneg %p256
        $region50: #{tpu_custom_call.1} parent=11 // pred_check_branch
          %326 = sbr.rel (%p324) target = $region52
        $region51: #{tpu_custom_call.1} parent=11 // pred_region
          _
        $region52: #{tpu_custom_call.1} parent=11 // pred_fallthru
          _
      $region12: #{tpu_custom_call.1} parent=5 // pred_fallthru
        _
      %p327 = scmp.lt.s32.totalorder %s20, 2
      // Predicated region
      $region53: #{tpu_custom_call.1} parent=5 // pred_check
        %p328 = pneg %p327
      $region54: #{tpu_custom_call.1} parent=5 // pred_check_branch
        %330 = sbr.rel (%p328) target = $region56
      $region55: #{tpu_custom_call.1} parent=5 // pred_region
        // Predicated region
        $region57: #{tpu_custom_call.1} parent=55 // pred_check
          %p331 = pneg %p40
        $region58: #{tpu_custom_call.1} parent=55 // pred_check_branch
          %333 = sbr.rel (%p331) target = $region60
        $region59: #{tpu_custom_call.1} parent=55 // pred_region
          %p334 = scmp.lt.s32.totalorder %s20, 1
          %s335 = scalar_select %p334, %s20, 1
          %s336 = smul.addr %s335, 2
          %s337 = smul.addr %s336, 4
          %s338 = scalar_lea.vmem %s0, %s337
        $region60: #{tpu_custom_call.1} parent=55 // pred_fallthru
          _
      $region56: #{tpu_custom_call.1} parent=5 // pred_fallthru
        _
      %p339 = scmp.le.s32.totalorder 1, %s20
      %p340 = scmp.lt.s32.totalorder %s20, 3
      %p341 = pnand %p339, %p340
      %p342 = pneg %p341
      // Predicated region
      $region61: #{tpu_custom_call.1} parent=5 // pred_check
        _
      $region62: #{tpu_custom_call.1} parent=5 // pred_check_branch
        %344 = sbr.rel (%p341) target = $region64
      $region63: #{tpu_custom_call.1} parent=5 // pred_region
        %s345 = ssub.s32 %s20, 1
        %p346 = scmp.lt.s32.totalorder %s25, 1
        %s347 = scalar_select %p346, %s25, 1
        %s348 = smul.addr %s347, 2
        %s349 = smul.addr %s348, 4
        %s350 = scalar_lea.vmem %s0, %s349
        %p351 = pneg %p46
        %p352 = pneg %p43
        %p353 = pneg %p67
        %p354 = pneg %p64
        %p355 = pneg %p88
        %p356 = pneg %p85
        %p357 = pneg %p109
        %p358 = pneg %p106
        %p359 = pneg %p130
        %p360 = pneg %p127
        %p361 = pneg %p151
        %p362 = pneg %p148
        %p363 = pneg %p172
        %p364 = pneg %p169
        %p365 = pneg %p193
        %p366 = pneg %p190
        %p367 = pneg %p214
        %p368 = pneg %p211
        %p369 = pneg %p235
        %p370 = pneg %p232
        %p371 = pneg %p256
        %p372 = pneg %p253
        %p373 = pneg %p282
        %p374 = pneg %p279
        %s375 = sand.u32 %s269, 1
        %s376 = scalar_lea.sflag [#allocation3], %s375
        %s377 = sand.u32 %s269, 1
        %s378 = smul.addr %s377, 8
        %s379 = scalar_lea.vmem [#allocation2], %s378
        %p380 = scmp.lt.s32.totalorder %s25, 1
        %s381 = scalar_select %p380, %s25, 1
        %s382 = smul.addr %s381, 2
        %s383 = smul.addr %s382, 4
        %s384 = scalar_lea.vmem %s0, %s383
        %v385 = vld [vmem:[%s1] sm:$0xff]
        %v386 = vld [vmem:[%s2] sm:$0xff]
        %v387 = vld [vmem:[%s3] sm:$0xf]
        %v388 = vld [vmem:[%s4] sm:$0xf]
        %v389 = vld [vmem:[%s5] sm:$0xf]
        %v390 = vld [vmem:[%s6] sm:$0xf]
        %v391 = vld [vmem:[%s7] sm:$0xff]
        %v392 = vld [vmem:[%s7 + $0x8] sm:$0xff]
        %v393 = vld [vmem:[%s7 + $0x10] sm:$0xff]
        %v394 = vld [vmem:[%s7 + $0x18] sm:$0xff]
        %v395 = vld [vmem:[%s7 + $0x20] sm:$0xff]
        %v396 = vld [vmem:[%s7 + $0x28] sm:$0xff]
        %v397 = vld [vmem:[%s7 + $0x30] sm:$0xff]
        %v398 = vld [vmem:[%s7 + $0x38] sm:$0xff]
        %v399 = vld [vmem:[%s7 + $0x40] sm:$0xff]
        %v400 = vld [vmem:[%s7 + $0x48] sm:$0xff]
        %v401 = vld [vmem:[%s7 + $0x50] sm:$0xff]
        %v402 = vld [vmem:[%s7 + $0x58] sm:$0xff]
        %v403 = vld [vmem:[%s7 + $0x60] sm:$0xff]
        %v404 = vld [vmem:[%s7 + $0x68] sm:$0xff]
        %v405 = vld [vmem:[%s7 + $0x70] sm:$0xff]
        %v406 = vld [vmem:[%s7 + $0x78] sm:$0xff]
        %v407 = vld [vmem:[%s7 + $0x80] sm:$0xff]
        %v408 = vld [vmem:[%s7 + $0x88] sm:$0xff]
        %v409 = vld [vmem:[%s7 + $0x90] sm:$0xff]
        %v410 = vld [vmem:[%s7 + $0x98] sm:$0xff]
        %v411 = vld [vmem:[%s7 + $0xa0] sm:$0xff]
        %v412 = vld [vmem:[%s7 + $0xa8] sm:$0xff]
        %v413 = vld [vmem:[%s7 + $0xb0] sm:$0xff]
        %v414 = vld [vmem:[%s7 + $0xb8] sm:$0xff]
        %v415 = vld [vmem:[%s7 + $0xc0] sm:$0xff]
        %v416 = vld [vmem:[%s7 + $0xc8] sm:$0xff]
        %v417 = vld [vmem:[%s7 + $0xd0] sm:$0xff]
        %v418 = vld [vmem:[%s7 + $0xd8] sm:$0xff]
        %v419 = vld [vmem:[%s7 + $0xe0] sm:$0xff]
        %v420 = vld [vmem:[%s7 + $0xe8] sm:$0xff]
        %v421 = vld [vmem:[%s7 + $0xf0] sm:$0xff]
        %v422 = vld [vmem:[%s7 + $0xf8] sm:$0xff]
        %v423 = vld [vmem:[%s8] sm:$0xff]
        %v424 = vld [vmem:[%s8 + $0x8] sm:$0xff]
        %v425 = vld [vmem:[%s8 + $0x10] sm:$0xff]
        %v426 = vld [vmem:[%s8 + $0x18] sm:$0xff]
        %v427 = vld [vmem:[%s8 + $0x20] sm:$0xff]
        %v428 = vld [vmem:[%s8 + $0x28] sm:$0xff]
        %v429 = vld [vmem:[%s8 + $0x30] sm:$0xff]
        %v430 = vld [vmem:[%s8 + $0x38] sm:$0xff]
        %v431 = vld [vmem:[%s8 + $0x40] sm:$0xff]
        %v432 = vld [vmem:[%s8 + $0x48] sm:$0xff]
        %v433 = vld [vmem:[%s8 + $0x50] sm:$0xff]
        %v434 = vld [vmem:[%s8 + $0x58] sm:$0xff]
        %v435 = vld [vmem:[%s8 + $0x60] sm:$0xff]
        %v436 = vld [vmem:[%s8 + $0x68] sm:$0xff]
        %v437 = vld [vmem:[%s8 + $0x70] sm:$0xff]
        %v438 = vld [vmem:[%s8 + $0x78] sm:$0xff]
        %v439 = vld [vmem:[%s8 + $0x80] sm:$0xff]
        %v440 = vld [vmem:[%s8 + $0x88] sm:$0xff]
        %v441 = vld [vmem:[%s8 + $0x90] sm:$0xff]
        %v442 = vld [vmem:[%s8 + $0x98] sm:$0xff]
        %v443 = vld [vmem:[%s8 + $0xa0] sm:$0xff]
        %v444 = vld [vmem:[%s8 + $0xa8] sm:$0xff]
        %v445 = vld [vmem:[%s8 + $0xb0] sm:$0xff]
        %v446 = vld [vmem:[%s8 + $0xb8] sm:$0xff]
        %v447 = vld [vmem:[%s8 + $0xc0] sm:$0xff]
        %v448 = vld [vmem:[%s8 + $0xc8] sm:$0xff]
        %v449 = vld [vmem:[%s8 + $0xd0] sm:$0xff]
        %v450 = vld [vmem:[%s8 + $0xd8] sm:$0xff]
        %v451 = vld [vmem:[%s8 + $0xe0] sm:$0xff]
        %v452 = vld [vmem:[%s8 + $0xe8] sm:$0xff]
        %v453 = vld [vmem:[%s8 + $0xf0] sm:$0xff]
        %v454 = vld [vmem:[%s8 + $0xf8] sm:$0xff]
        %v455 = vld [vmem:[%s9] sm:$0xff]
        %v456 = vld [vmem:[%s9 + $0x8] sm:$0xff]
        %v457 = vld [vmem:[%s9 + $0x10] sm:$0xff]
        %v458 = vld [vmem:[%s9 + $0x18] sm:$0xff]
        %v459 = vld [vmem:[%s10] sm:$0xff]
        %v460 = vld [vmem:[%s10 + $0x8] sm:$0xff]
        %v461 = vld [vmem:[%s10 + $0x10] sm:$0xff]
        %v462 = vld [vmem:[%s10 + $0x18] sm:$0xff]
        %v463 = vld [vmem:[%s384] sm:$0xff]
        %465 = vst [vmem:[#allocation1] ss:$2 sm:$0xff] %v463
        %v466 = vld.sshfl [vmem:[#allocation1] sm:$0xff pattern:$0x75316420]
        %v467 = vld.sshfl [vmem:[#allocation1 + $0x8] sm:$0xff pattern:$0x75316420]
        %470 = vmatpush.msra.mxu0 %v406
        %471 = vmatpush.msra.mxu0 %v405
        %472 = vmatpush.msra.mxu0 %v404
        %473 = vmatpush.msra.mxu0 %v403
        %474 = vmatpush.msra.mxu0 %v402
        %475 = vmatpush.msra.mxu0 %v401
        %476 = vmatpush.msra.mxu0 %v400
        %477 = vmatpush.msra.mxu0 %v399
        %478 = vmatpush.msra.mxu0 %v398
        %479 = vmatpush.msra.mxu0 %v397
        %480 = vmatpush.msra.mxu0 %v396
        %481 = vmatpush.msra.mxu0 %v395
        %482 = vmatpush.msra.mxu0 %v394
        %483 = vmatpush.msra.mxu0 %v393
        %484 = vmatpush.msra.mxu0 %v392
        %485 = vmatpush.msra.mxu0 %v391
        %486 = vmatmul.f32.gmra.mxu0 %v466
        %v487 = vpop.f32.mrf.mxu0
        %v488 = vadd.f32 0.0, %v487
        %489 = vdwg.mxu0
        %490 = vmatpush.msra.mxu0 %v422
        %491 = vmatpush.msra.mxu0 %v421
        %492 = vmatpush.msra.mxu0 %v420
        %493 = vmatpush.msra.mxu0 %v419
        %494 = vmatpush.msra.mxu0 %v418
        %495 = vmatpush.msra.mxu0 %v417
        %496 = vmatpush.msra.mxu0 %v416
        %497 = vmatpush.msra.mxu0 %v415
        %498 = vmatpush.msra.mxu0 %v414
        %499 = vmatpush.msra.mxu0 %v413
        %500 = vmatpush.msra.mxu0 %v412
        %501 = vmatpush.msra.mxu0 %v411
        %502 = vmatpush.msra.mxu0 %v410
        %503 = vmatpush.msra.mxu0 %v409
        %504 = vmatpush.msra.mxu0 %v408
        %505 = vmatpush.msra.mxu0 %v407
        %506 = vmatmul.f32.gmra.mxu0 %v467
        %v507 = vpop.f32.mrf.mxu0
        %v508 = vadd.f32 %v488, %v507
        %509 = vdwg.mxu0
        %510 = vst [vmem:[#allocation1] ss:$2 sm:$0xff] %v463
        %v511 = vld.sshfl [vmem:[#allocation1] sm:$0xff pattern:$0x75316420]
        %v512 = vld.sshfl [vmem:[#allocation1 + $0x8] sm:$0xff pattern:$0x75316420]
        %515 = vmatpush.msra.mxu0 %v438
        %516 = vmatpush.msra.mxu0 %v437
        %517 = vmatpush.msra.mxu0 %v436
        %518 = vmatpush.msra.mxu0 %v435
        %519 = vmatpush.msra.mxu0 %v434
        %520 = vmatpush.msra.mxu0 %v433
        %521 = vmatpush.msra.mxu0 %v432
        %522 = vmatpush.msra.mxu0 %v431
        %523 = vmatpush.msra.mxu0 %v430
        %524 = vmatpush.msra.mxu0 %v429
        %525 = vmatpush.msra.mxu0 %v428
        %526 = vmatpush.msra.mxu0 %v427
        %527 = vmatpush.msra.mxu0 %v426
        %528 = vmatpush.msra.mxu0 %v425
        %529 = vmatpush.msra.mxu0 %v424
        %530 = vmatpush.msra.mxu0 %v423
        %531 = vmatmul.f32.gmra.mxu0 %v511
        %v532 = vpop.f32.mrf.mxu0
        %v533 = vadd.f32 0.0, %v532
        %534 = vdwg.mxu0
        %535 = vmatpush.msra.mxu0 %v454
        %536 = vmatpush.msra.mxu0 %v453
        %537 = vmatpush.msra.mxu0 %v452
        %538 = vmatpush.msra.mxu0 %v451
        %539 = vmatpush.msra.mxu0 %v450
        %540 = vmatpush.msra.mxu0 %v449
        %541 = vmatpush.msra.mxu0 %v448
        %542 = vmatpush.msra.mxu0 %v447
        %543 = vmatpush.msra.mxu0 %v446
        %544 = vmatpush.msra.mxu0 %v445
        %545 = vmatpush.msra.mxu0 %v444
        %546 = vmatpush.msra.mxu0 %v443
        %547 = vmatpush.msra.mxu0 %v442
        %548 = vmatpush.msra.mxu0 %v441
        %549 = vmatpush.msra.mxu0 %v440
        %550 = vmatpush.msra.mxu0 %v439
        %551 = vmatmul.f32.gmra.mxu0 %v512
        %v552 = vpop.f32.mrf.mxu0
        %v553 = vadd.f32 %v533, %v552
        %554 = vdwg.mxu0
        %556 = vrot.lane.b32.xlu0 %v553, 16
        %v557 = vpop.permute.xlu0 %556
        %vm559 = vcmask 130048
        %v560 = vsel %vm559, %v508, %v557
        %562 = vset.pattern.permute.xlu0 0
        %563 = vperm.xlu0 %562, %v386
        %v564 = vpop.permute.xlu0 %563
        %vm566 = vcmask 31744
        %v568 = vsel %vm566, %v385, 0
        %vm570 = vcmask 1043456
        %v572 = vsel %vm570, %v560, 0
        %574 = vmatpush.msra.mxu0 0.0
        %575 = vmatpush.msra.mxu0 0.0
        %576 = vmatpush.msra.mxu0 0.0
        %577 = vmatpush.msra.mxu0 0.0
        %578 = vmatpush.msra.mxu0 0.0
        %579 = vmatpush.msra.mxu0 0.0
        %580 = vmatpush.msra.mxu0 0.0
        %581 = vmatpush.msra.mxu0 0.0
        %582 = vmatpush.msra.mxu0 0.0
        %583 = vmatpush.msra.mxu0 0.0
        %584 = vmatpush.msra.mxu0 0.0
        %585 = vmatpush.msra.mxu0 0.0
        %586 = vmatpush.msra.mxu0 0.0
        %587 = vmatpush.msra.mxu0 0.0
        %588 = vmatpush.msra.mxu0 0.0
        %589 = vmatpush.msra.mxu0 %v572
        %590 = vmatmul.f32.gmra.mxu0 %v568
        %v591 = vpop.f32.mrf.mxu0
        %v592 = vadd.f32 %v564, %v591
        %593 = vdwg.mxu0
        %v594 = vadd.f32 %v592, 3.0
        %v595 = vmax.f32 %v594, 0.0
        %v596 = vmin.f32 %v595, 6.0
        %v597 = vmul.f32 %v592, %v596
        %v598 = vmul.f32 %v597, 0.16666667
        %600 = vset.pattern.permute.xlu0 0
        %601 = vperm.xlu0 %600, %v388
        %v602 = vpop.permute.xlu0 %601
        %vm604 = vcmask 64512
        %v606 = vsel %vm604, %v387, 0
        %608 = vmatpush.msra.mxu0 0.0
        %609 = vmatpush.msra.mxu0 0.0
        %610 = vmatpush.msra.mxu0 0.0
        %611 = vmatpush.msra.mxu0 0.0
        %612 = vmatpush.msra.mxu0 0.0
        %613 = vmatpush.msra.mxu0 0.0
        %614 = vmatpush.msra.mxu0 0.0
        %615 = vmatpush.msra.mxu0 0.0
        %616 = vmatpush.msra.mxu0 0.0
        %617 = vmatpush.msra.mxu0 0.0
        %618 = vmatpush.msra.mxu0 0.0
        %619 = vmatpush.msra.mxu0 0.0
        %620 = vmatpush.msra.mxu0 0.0
        %621 = vmatpush.msra.mxu0 0.0
        %622 = vmatpush.msra.mxu0 0.0
        %623 = vmatpush.msra.mxu0 %v598
        %624 = vmatmul.f32.gmra.mxu0 %v606
        %v625 = vpop.f32.mrf.mxu0
        %v626 = vadd.f32 %v602, %v625
        %627 = vdwg.mxu0
        %v628 = vxor.u32 %v626, 2147483648
        %v629 = vmul.f32 %v628, 1.442695
        %v630 = vpow.pop %v629
        %v631 = vadd.f32 %v630, 1.0
        %v632 = vrcp.pop %v631
        %v633 = vmul.f32 %v631, %v632
        %v634 = vsub.f32 1.0, %v633
        %v635 = vmul.f32 %v632, %v634
        %v636 = vadd.f32 %v632, %v635
        %vm637 = vweird.f32 %v631
        %vm638 = vweird.f32 %v632
        %vm639 = vmor %vm637, %vm638
        %v640 = vsel %vm639, %v632, %v636
        %v641 = vand.u32 2147483647, %v631
        %vm642 = vcmp.eq.f32.partialorder %v641, 8.507059e+37
        %v643 = vand.u32 %v631, 2147483648
        %v644 = vor.u32 1.1754944e-38, %v643
        %v645 = vsel %vm642, %v644, %v640
        %v646 = vmul.f32 1.0, %v645
        %648 = vset.pattern.permute.xlu0 0
        %649 = vperm.xlu0 %648, %v390
        %v650 = vpop.permute.xlu0 %649
        %653 = vrot.lane.b32.xlu0 %v598, 112
        %v654 = vpop.permute.xlu0 %653
        %v657 = vsel %vm604, %v389, 0
        %659 = vmatpush.msra.mxu0 0.0
        %660 = vmatpush.msra.mxu0 0.0
        %661 = vmatpush.msra.mxu0 0.0
        %662 = vmatpush.msra.mxu0 0.0
        %663 = vmatpush.msra.mxu0 0.0
        %664 = vmatpush.msra.mxu0 0.0
        %665 = vmatpush.msra.mxu0 0.0
        %666 = vmatpush.msra.mxu0 0.0
        %667 = vmatpush.msra.mxu0 0.0
        %668 = vmatpush.msra.mxu0 0.0
        %669 = vmatpush.msra.mxu0 0.0
        %670 = vmatpush.msra.mxu0 0.0
        %671 = vmatpush.msra.mxu0 0.0
        %672 = vmatpush.msra.mxu0 0.0
        %673 = vmatpush.msra.mxu0 0.0
        %674 = vmatpush.msra.mxu0 %v654
        %675 = vmatmul.f32.gmra.mxu0 %v657
        %v676 = vpop.f32.mrf.mxu0
        %v677 = vadd.f32 %v650, %v676
        %678 = vdwg.mxu0
        %v679 = vxor.u32 %v677, 2147483648
        %v680 = vmul.f32 %v679, 1.442695
        %v681 = vpow.pop %v680
        %v682 = vadd.f32 %v681, 1.0
        %v683 = vrcp.pop %v682
        %v684 = vmul.f32 %v682, %v683
        %v685 = vsub.f32 1.0, %v684
        %v686 = vmul.f32 %v683, %v685
        %v687 = vadd.f32 %v683, %v686
        %vm688 = vweird.f32 %v682
        %vm689 = vweird.f32 %v683
        %vm690 = vmor %vm688, %vm689
        %v691 = vsel %vm690, %v683, %v687
        %v692 = vand.u32 2147483647, %v682
        %vm693 = vcmp.eq.f32.partialorder %v692, 8.507059e+37
        %v694 = vand.u32 %v682, 2147483648
        %v695 = vor.u32 1.1754944e-38, %v694
        %v696 = vsel %vm693, %v695, %v691
        %v697 = vmul.f32 1.0, %v696
        %v699 = vsel %vm559, %v646, 0
        %701 = vmatpush.msra.mxu0 0.0
        %702 = vmatpush.msra.mxu0 0.0
        %703 = vmatpush.msra.mxu0 0.0
        %704 = vmatpush.msra.mxu0 0.0
        %705 = vmatpush.msra.mxu0 0.0
        %706 = vmatpush.msra.mxu0 0.0
        %707 = vmatpush.msra.mxu0 0.0
        %708 = vmatpush.msra.mxu0 0.0
        %709 = vmatpush.msra.mxu0 0.0
        %710 = vmatpush.msra.mxu0 0.0
        %711 = vmatpush.msra.mxu0 0.0
        %712 = vmatpush.msra.mxu0 0.0
        %713 = vmatpush.msra.mxu0 0.0
        %714 = vmatpush.msra.mxu0 0.0
        %715 = vmatpush.msra.mxu0 %v457
        %716 = vmatpush.msra.mxu0 %v455
        %717 = vmatmul.f32.gmra.mxu0 %v699
        %v718 = vpop.f32.mrf.mxu0
        %v719 = vadd.f32 0.0, %v718
        %720 = vdwg.mxu0
        %721 = vmatpush.msra.mxu0 0.0
        %722 = vmatpush.msra.mxu0 0.0
        %723 = vmatpush.msra.mxu0 0.0
        %724 = vmatpush.msra.mxu0 0.0
        %725 = vmatpush.msra.mxu0 0.0
        %726 = vmatpush.msra.mxu0 0.0
        %727 = vmatpush.msra.mxu0 0.0
        %728 = vmatpush.msra.mxu0 0.0
        %729 = vmatpush.msra.mxu0 0.0
        %730 = vmatpush.msra.mxu0 0.0
        %731 = vmatpush.msra.mxu0 0.0
        %732 = vmatpush.msra.mxu0 0.0
        %733 = vmatpush.msra.mxu0 0.0
        %734 = vmatpush.msra.mxu0 0.0
        %735 = vmatpush.msra.mxu0 %v458
        %736 = vmatpush.msra.mxu0 %v456
        %737 = vmatmul.f32.gmra.mxu0 %v699
        %v738 = vpop.f32.mrf.mxu0
        %v739 = vadd.f32 0.0, %v738
        %740 = vdwg.mxu0
        %v742 = vsel %vm559, %v697, 0
        %744 = vmatpush.msra.mxu0 0.0
        %745 = vmatpush.msra.mxu0 0.0
        %746 = vmatpush.msra.mxu0 0.0
        %747 = vmatpush.msra.mxu0 0.0
        %748 = vmatpush.msra.mxu0 0.0
        %749 = vmatpush.msra.mxu0 0.0
        %750 = vmatpush.msra.mxu0 0.0
        %751 = vmatpush.msra.mxu0 0.0
        %752 = vmatpush.msra.mxu0 0.0
        %753 = vmatpush.msra.mxu0 0.0
        %754 = vmatpush.msra.mxu0 0.0
        %755 = vmatpush.msra.mxu0 0.0
        %756 = vmatpush.msra.mxu0 0.0
        %757 = vmatpush.msra.mxu0 0.0
        %758 = vmatpush.msra.mxu0 %v461
        %759 = vmatpush.msra.mxu0 %v459
        %760 = vmatmul.f32.gmra.mxu0 %v742
        %v761 = vpop.f32.mrf.mxu0
        %v762 = vadd.f32 0.0, %v761
        %763 = vdwg.mxu0
        %764 = vmatpush.msra.mxu0 0.0
        %765 = vmatpush.msra.mxu0 0.0
        %766 = vmatpush.msra.mxu0 0.0
        %767 = vmatpush.msra.mxu0 0.0
        %768 = vmatpush.msra.mxu0 0.0
        %769 = vmatpush.msra.mxu0 0.0
        %770 = vmatpush.msra.mxu0 0.0
        %771 = vmatpush.msra.mxu0 0.0
        %772 = vmatpush.msra.mxu0 0.0
        %773 = vmatpush.msra.mxu0 0.0
        %774 = vmatpush.msra.mxu0 0.0
        %775 = vmatpush.msra.mxu0 0.0
        %776 = vmatpush.msra.mxu0 0.0
        %777 = vmatpush.msra.mxu0 0.0
        %778 = vmatpush.msra.mxu0 %v462
        %779 = vmatpush.msra.mxu0 %v460
        %780 = vmatmul.f32.gmra.mxu0 %v742
        %v781 = vpop.f32.mrf.mxu0
        %v782 = vadd.f32 0.0, %v781
        %783 = vdwg.mxu0
        %v784 = vmul.f32 %v719, %v762
        %v785 = vmul.f32 %v739, %v782
        %v788 = vrot.slane %v785, 4
        %v789 = vsel %vm570, %v784, %v788
        %v791 = vmul.f32 %v463, %v789
        %792 = vst [vmem:[%s379] sm:$0xff] %v791
        %s793 = sand.u32 %s269, 1
        %s794 = scalar_lea.sflag [#allocation3], %s793
        %s795 = sand.u32 %s269, 1
        %s796 = smul.addr %s795, 8
        %s797 = scalar_lea.vmem [#allocation2], %s796
        // Predicated region
        $region65: #{tpu_custom_call.1} parent=63 // pred_check
          %p798 = pneg %p279
        $region66: #{tpu_custom_call.1} parent=63 // pred_check_branch
          %800 = sbr.rel (%p798) target = $region68
        $region67: #{tpu_custom_call.1} parent=63 // pred_region
          %802 = vsyncadd %s794, 0
          %s803 = smul.addr %s25, 2
          %s804 = smul.addr %s803, 4
          %s805 = scalar_lea.hbm %s11, %s804
          %s807 = sshll.u32 %s797, 4
          %s808 = int_to_ptr.vmem [resolvable:$true] %s807
          %s809 = sshll.u32 %s805, 4
          %s810 = int_to_ptr.hbm [resolvable:$true] %s809
          %812 = dma.vmem_to_hbm [thread:$0]  %s808, 128, %s810, %s794
        $region68: #{tpu_custom_call.1} parent=63 // pred_fallthru
          _
      $region64: #{tpu_custom_call.1} parent=5 // pred_fallthru
        _
      %p813 = scmp.le.s32.totalorder 2, %s20
      // Predicated region
      $region69: #{tpu_custom_call.1} parent=5 // pred_check
        %p814 = pneg %p813
      $region70: #{tpu_custom_call.1} parent=5 // pred_check_branch
        %816 = sbr.rel (%p814) target = $region72
      $region71: #{tpu_custom_call.1} parent=5 // pred_region
        %s817 = ssub.s32 %s20, 2
        // Predicated region
        $region73: #{tpu_custom_call.1} parent=71 // pred_check
          %p818 = pneg %p285
        $region74: #{tpu_custom_call.1} parent=71 // pred_check_branch
          %820 = sbr.rel (%p818) target = $region76
        $region75: #{tpu_custom_call.1} parent=71 // pred_region
          %s821 = sand.u32 %s270, 1
          %s822 = scalar_lea.sflag [#allocation3], %s821
          %s823 = sand.u32 %s270, 1
          %s824 = smul.addr %s823, 8
          %s825 = scalar_lea.vmem [#allocation2], %s824
          %827 = dma.done %s822, 128
        $region76: #{tpu_custom_call.1} parent=71 // pred_fallthru
          _
      $region72: #{tpu_custom_call.1} parent=5 // pred_fallthru
        _
    $region6: #{tpu_custom_call.1} parent=1 // loop_footer
      %s24 = sadd.s32 1, %s20
    $region7: #{tpu_custom_call.1} parent=1 // loop_footer_branch
      %19 = sbr.rel target = $region3
    $region8: #{tpu_custom_call.1} parent=1 // loop_exit
      _
    %828 = vsyncpa [#allocation3], 1
    %s829 = scalar_lea.sflag [#allocation3], 1
    %830 = vsyncpa %s829, 1

</llo_original>
